<compile_context>
chip_gen: v5e
topology: v5e:2x2
jax: 0.10.0
libtpu: 0.0.40
codegen_flags: <defaults>
</compile_context>

<pallas_src>
import jax
import jax.numpy as jnp
from jax import lax
from jax.experimental import pallas as pl
from jax.experimental.pallas import tpu as pltpu


def _round_up(x, m):
    return ((x + m - 1) // m) * m


def _default_act_dtype():
    """bf16 activations on chips with a bf16 VPU/EUP (v6e+); f32 otherwise."""
    try:
        kind = jax.devices()[0].device_kind.lower()
    except Exception:
        return jnp.float32
    for old in ("v2", "v3", "v4", "v5"):   # no bf16 VPU/EUP on these
        if old in kind:
            return jnp.float32
    return jnp.bfloat16


def _make_kernel(act_dtype):
    """Kernel closure over the activation dtype (bf16 on v6e/v7x, f32 on v5e)."""

    def kernel(x_ref,
               w1_ref, b1_ref,
               w2_ref, b2_ref,
               w3_ref, b3_ref,
               w4_ref, b4_ref,
               o_ref):
        half = jnp.asarray(0.5, act_dtype)

        def act(pre_f32, b_ref):
            # Bias-add + sigmoid in act_dtype; sigmoid(x) = 0.5*tanh(0.5*x)+0.5
            # is a single EUP push per vreg (vs exp + recip).
            z = pre_f32.astype(act_dtype) + b_ref[...].astype(act_dtype)
            return half * jnp.tanh(half * z) + half

        # In-kernel f32->bf16 cast of the streamed x tile (hidden under MXU/EUP).
        xt = x_ref[...].astype(jnp.bfloat16)                    # (tile, n_in)

        # Layer 1: contract over x's last dim -> (n1, tile); batch rides lanes.
        h = lax.dot_general(w1_ref[...], xt, (((1,), (1,)), ((), ())),
                            preferred_element_type=jnp.float32)  # (n1, tile)
        h = act(h, b1_ref)

        # Layer 2: (n2, n1) x (n1, tile) -> (n2, tile)
        h = jnp.dot(w2_ref[...], h.astype(jnp.bfloat16),
                    preferred_element_type=jnp.float32)
        h = act(h, b2_ref)

        # Layer 3: (n3, n2) x (n2, tile) -> (n3, tile)
        h = jnp.dot(w3_ref[...], h.astype(jnp.bfloat16),
                    preferred_element_type=jnp.float32)
        h = act(h, b3_ref)

        # Final 1-wide layer: (1, n3) x (n3, tile) -> lane-dense (1, tile).
        y = jnp.dot(w4_ref[...], h.astype(jnp.bfloat16),
                    preferred_element_type=jnp.float32) + b4_ref[...]
        o_ref[...] = y.astype(o_ref.dtype)

    return kernel


def sigmoid_net_forward(x, params, *, batch_tile=4096, activation_dtype=None):
    """x: [B, N_In] float32.  params: W_i [in, out], b_i [1, out] (f32)."""
    B, n_in = x.shape
    if activation_dtype is None:
        activation_dtype = _default_act_dtype()

    # Weights in torch-style (out, in) layout so the batch sits on the lane
    # axis of every activation; biases as (out, 1) columns for lane broadcast.
    # (Tiny parameter arrays: negligible wrapper-side work, amortized anyway.)
    w1 = params["w1"].T.astype(jnp.bfloat16)   # (n1, n_in)
    w2 = params["w2"].T.astype(jnp.bfloat16)   # (n2, n1)
    w3 = params["w3"].T.astype(jnp.bfloat16)   # (n3, n2)
    w4 = params["w4"].T.astype(jnp.bfloat16)   # (1,  n3)
    b1 = params["b1"].T                        # (n1, 1) f32
    b2 = params["b2"].T                        # (n2, 1) f32
    b3 = params["b3"].T                        # (n3, 1) f32
    b4 = params["b4"].T                        # (1,  1) f32
    n1, n2, n3 = w1.shape[0], w2.shape[0], w3.shape[0]

    # Batch tiling: tile is a multiple of 128 (lane axis of the output), as
    # large as possible to amortize ~0.35us/step grid overhead; for large
    # batches force an even (>=4) step count so v7x's two TensorCores balance.
    tile_cap = max(128, _round_up(min(batch_tile, B), 128))
    num_tiles = pl.cdiv(B, tile_cap)
    if B >= 1024:
        num_tiles = max(4, num_tiles)
        if num_tiles % 2:
            num_tiles += 1
    tile = _round_up(pl.cdiv(B, num_tiles), 128)
    b_pad = tile * num_tiles

    if b_pad != B:
        # Rows are independent; zero-padded rows are computed and sliced off.
        x = jnp.pad(x, ((0, b_pad - B), (0, 0)))
    # NOTE: x stays f32 here; the bf16 cast is done per-tile inside the kernel.

    def resident(arr):
        # Same block every grid step -> parameter stays resident in VMEM.
        return pl.BlockSpec(arr.shape, lambda i: (0, 0))

    grid_spec = pl.GridSpec(
        grid=(num_tiles,),
        in_specs=[
            pl.BlockSpec((tile, n_in), lambda i: (i, 0)),   # streamed x tile
            resident(w1), resident(b1),
            resident(w2), resident(b2),
            resident(w3), resident(b3),
            resident(w4), resident(b4),
        ],
        out_specs=pl.BlockSpec((1, tile), lambda i: (0, i)),  # lane-dense store
    )

    out = pl.pallas_call(
        _make_kernel(activation_dtype),
        out_shape=jax.ShapeDtypeStruct((1, b_pad), jnp.float32),
        grid_spec=grid_spec,
        compiler_params=pltpu.CompilerParams(
            dimension_semantics=("parallel",),
            # Even a 4096-row tile uses only a few MiB; 32 MiB is safely below
            # every generation's physical VMEM (64 MiB on v7x).
            vmem_limit_bytes=32 * 1024 * 1024,
        ),
    )(x, w1, b1, w2, b2, w3, b3, w4, b4)

    return out.reshape(b_pad, 1)[:B]


def init_params(key, n_in, n1, n2, n3):
    """Deterministic init mimicking torch.nn.Linear's U(-1/sqrt(in), 1/sqrt(in))."""
    dims = [(n_in, n1), (n1, n2), (n2, n3), (n3, 1)]
    params = {}
    for idx, (fan_in, fan_out) in enumerate(dims, start=1):
        key, kw, kb = jax.random.split(key, 3)
        bound = 1.0 / jnp.sqrt(jnp.float32(fan_in))
        params[f"w{idx}"] = jax.random.uniform(
            kw, (fan_in, fan_out), jnp.float32, minval=-bound, maxval=bound)
        params[f"b{idx}"] = jax.random.uniform(
            kb, (1, fan_out), jnp.float32, minval=-bound, maxval=bound)
    return params


def reference_forward(x, params):
    h = jax.nn.sigmoid(x @ params["w1"] + params["b1"])
    h = jax.nn.sigmoid(h @ params["w2"] + params["b2"])
    h = jax.nn.sigmoid(h @ params["w3"] + params["b3"])
    return h @ params["w4"] + params["b4"]


if __name__ == "__main__":
    # Small shapes consistent with SigmoidNet(N_In, N1, N2, N3)
    N_IN, N1, N2, N3 = 32, 64, 32, 16

    key = jax.random.PRNGKey(0)
    key, kp = jax.random.split(key)
    params = init_params(kp, N_IN, N1, N2, N3)

    def check(x, out, atol=5e-2):
        ref = reference_forward(x, params)
        assert out.shape == ref.shape, (out.shape, ref.shape)
        err = jnp.max(jnp.abs(out - ref))
        assert jnp.allclose(out, ref, atol=atol, rtol=atol), \
            f"mismatch vs reference: max abs err = {err}"

    # Case 1: small batch -> single 128-row tile, auto activation dtype.
    key, kx = jax.random.split(key)
    x1 = jax.random.normal(kx, (32, N_IN), jnp.float32)
    out1 = jax.block_until_ready(sigmoid_net_forward(x1, params))
    check(x1, out1)

    # Case 2: ragged batch -> zero-padded single-step grid.
    key, kx = jax.random.split(key)
    x2 = jax.random.normal(kx, (13, N_IN), jnp.float32)
    out2 = jax.block_until_ready(sigmoid_net_forward(x2, params))
    check(x2, out2)

    # Case 3: multi-step "parallel" grid (3 tiles of 128 rows).
    key, kx = jax.random.split(key)
    x3 = jax.random.normal(kx, (300, N_IN), jnp.float32)
    out3 = jax.block_until_ready(sigmoid_net_forward(x3, params, batch_tile=128))
    check(x3, out3)

    # Case 4: force the f32 activation path (v5e-style) regardless of chip.
    out4 = jax.block_until_ready(
        sigmoid_net_forward(x1, params, activation_dtype=jnp.float32))
    check(x1, out4)

    print("KERNEL_OK")
</pallas_src>

<mosaic_0001>
module attributes {stable_mosaic.version = 11 : i64} {
  func.func @kernel(%arg0: i32, %arg1: memref<128x32xf32, #tpu.memory_space<vmem>>, %arg2: memref<64x32xbf16, #tpu.memory_space<vmem>>, %arg3: memref<64x1xf32, #tpu.memory_space<vmem>>, %arg4: memref<32x64xbf16, #tpu.memory_space<vmem>>, %arg5: memref<32x1xf32, #tpu.memory_space<vmem>>, %arg6: memref<16x32xbf16, #tpu.memory_space<vmem>>, %arg7: memref<16x1xf32, #tpu.memory_space<vmem>>, %arg8: memref<1x16xbf16, #tpu.memory_space<vmem>>, %arg9: memref<1x1xf32, #tpu.memory_space<vmem>>, %arg10: memref<1x128xf32, #tpu.memory_space<vmem>>) attributes {dimension_semantics = [#tpu.dimension_semantics<parallel>], iteration_bounds = array<i64: 1>, scalar_prefetch = 0 : i64, scratch_operands = 0 : i64, tpu.core_type = #tpu.core_type<tc>, window_params = [{transform_indices = @transform_0, window_bounds = array<i64: 128, 32>}, {pipeline_mode = #tpu.pipeline_mode<synchronous>, transform_indices = @transform_1, window_bounds = array<i64: 64, 32>}, {pipeline_mode = #tpu.pipeline_mode<synchronous>, transform_indices = @transform_2, window_bounds = array<i64: 64, 1>}, {pipeline_mode = #tpu.pipeline_mode<synchronous>, transform_indices = @transform_3, window_bounds = array<i64: 32, 64>}, {pipeline_mode = #tpu.pipeline_mode<synchronous>, transform_indices = @transform_4, window_bounds = array<i64: 32, 1>}, {pipeline_mode = #tpu.pipeline_mode<synchronous>, transform_indices = @transform_5, window_bounds = array<i64: 16, 32>}, {pipeline_mode = #tpu.pipeline_mode<synchronous>, transform_indices = @transform_6, window_bounds = array<i64: 16, 1>}, {pipeline_mode = #tpu.pipeline_mode<synchronous>, transform_indices = @transform_7, window_bounds = array<i64: 1, 16>}, {pipeline_mode = #tpu.pipeline_mode<synchronous>, transform_indices = @transform_8, window_bounds = array<i64: 1, 1>}, {transform_indices = @transform_9, window_bounds = array<i64: 1, 128>}]} {
    %c0 = arith.constant 0 : index
    %c0_0 = arith.constant 0 : index
    %0 = vector.load %arg1[%c0, %c0_0] : memref<128x32xf32, #tpu.memory_space<vmem>>, vector<128x32xf32>
    %1 = arith.truncf %0 : vector<128x32xf32> to vector<128x32xbf16>
    %c0_1 = arith.constant 0 : index
    %c0_2 = arith.constant 0 : index
    %2 = vector.load %arg2[%c0_1, %c0_2] : memref<64x32xbf16, #tpu.memory_space<vmem>>, vector<64x32xbf16>
    %cst = arith.constant dense<0.000000e+00> : vector<64x128xf32>
    %3 = tpu.matmul %2, %1, %cst {dimension_numbers = #tpu.dot_dimension_numbers<[1], [1], [0], [0], [0, 0, 1, 0], [], []>} : vector<64x32xbf16>, vector<128x32xbf16>, vector<64x128xf32> -> vector<64x128xf32>
    %4 = arith.truncf %3 : vector<64x128xf32> to vector<64x128xbf16>
    %c0_3 = arith.constant 0 : index
    %c0_4 = arith.constant 0 : index
    %5 = vector.load %arg3[%c0_3, %c0_4] : memref<64x1xf32, #tpu.memory_space<vmem>>, vector<64x1xf32>
    %6 = arith.truncf %5 : vector<64x1xf32> to vector<64x1xbf16>
    %7 = vector.broadcast %6 : vector<64x1xbf16> to vector<64x128xbf16>
    %8 = arith.addf %4, %7 : vector<64x128xbf16>
    %cst_5 = arith.constant 5.000000e-01 : bf16
    %9 = vector.broadcast %cst_5 : bf16 to vector<64x128xbf16>
    %10 = arith.mulf %9, %8 : vector<64x128xbf16>
    %11 = math.tanh %10 : vector<64x128xbf16>
    %cst_6 = arith.constant 5.000000e-01 : bf16
    %12 = vector.broadcast %cst_6 : bf16 to vector<64x128xbf16>
    %13 = arith.mulf %12, %11 : vector<64x128xbf16>
    %cst_7 = arith.constant 5.000000e-01 : bf16
    %14 = vector.broadcast %cst_7 : bf16 to vector<64x128xbf16>
    %15 = arith.addf %13, %14 : vector<64x128xbf16>
    %c0_8 = arith.constant 0 : index
    %c0_9 = arith.constant 0 : index
    %16 = vector.load %arg4[%c0_8, %c0_9] : memref<32x64xbf16, #tpu.memory_space<vmem>>, vector<32x64xbf16>
    %cst_10 = arith.constant dense<0.000000e+00> : vector<32x128xf32>
    %17 = tpu.matmul %16, %15, %cst_10 {dimension_numbers = #tpu.dot_dimension_numbers<[1], [0], [0], [1], [0, 0, 1, 1], [], []>} : vector<32x64xbf16>, vector<64x128xbf16>, vector<32x128xf32> -> vector<32x128xf32>
    %18 = arith.truncf %17 : vector<32x128xf32> to vector<32x128xbf16>
    %c0_11 = arith.constant 0 : index
    %c0_12 = arith.constant 0 : index
    %19 = vector.load %arg5[%c0_11, %c0_12] : memref<32x1xf32, #tpu.memory_space<vmem>>, vector<32x1xf32>
    %20 = arith.truncf %19 : vector<32x1xf32> to vector<32x1xbf16>
    %21 = vector.broadcast %20 : vector<32x1xbf16> to vector<32x128xbf16>
    %22 = arith.addf %18, %21 : vector<32x128xbf16>
    %cst_13 = arith.constant 5.000000e-01 : bf16
    %23 = vector.broadcast %cst_13 : bf16 to vector<32x128xbf16>
    %24 = arith.mulf %23, %22 : vector<32x128xbf16>
    %25 = math.tanh %24 : vector<32x128xbf16>
    %cst_14 = arith.constant 5.000000e-01 : bf16
    %26 = vector.broadcast %cst_14 : bf16 to vector<32x128xbf16>
    %27 = arith.mulf %26, %25 : vector<32x128xbf16>
    %cst_15 = arith.constant 5.000000e-01 : bf16
    %28 = vector.broadcast %cst_15 : bf16 to vector<32x128xbf16>
    %29 = arith.addf %27, %28 : vector<32x128xbf16>
    %c0_16 = arith.constant 0 : index
    %c0_17 = arith.constant 0 : index
    %30 = vector.load %arg6[%c0_16, %c0_17] : memref<16x32xbf16, #tpu.memory_space<vmem>>, vector<16x32xbf16>
    %cst_18 = arith.constant dense<0.000000e+00> : vector<16x128xf32>
    %31 = tpu.matmul %30, %29, %cst_18 {dimension_numbers = #tpu.dot_dimension_numbers<[1], [0], [0], [1], [0, 0, 1, 1], [], []>} : vector<16x32xbf16>, vector<32x128xbf16>, vector<16x128xf32> -> vector<16x128xf32>
    %32 = arith.truncf %31 : vector<16x128xf32> to vector<16x128xbf16>
    %c0_19 = arith.constant 0 : index
    %c0_20 = arith.constant 0 : index
    %33 = vector.load %arg7[%c0_19, %c0_20] : memref<16x1xf32, #tpu.memory_space<vmem>>, vector<16x1xf32>
    %34 = arith.truncf %33 : vector<16x1xf32> to vector<16x1xbf16>
    %35 = vector.broadcast %34 : vector<16x1xbf16> to vector<16x128xbf16>
    %36 = arith.addf %32, %35 : vector<16x128xbf16>
    %cst_21 = arith.constant 5.000000e-01 : bf16
    %37 = vector.broadcast %cst_21 : bf16 to vector<16x128xbf16>
    %38 = arith.mulf %37, %36 : vector<16x128xbf16>
    %39 = math.tanh %38 : vector<16x128xbf16>
    %cst_22 = arith.constant 5.000000e-01 : bf16
    %40 = vector.broadcast %cst_22 : bf16 to vector<16x128xbf16>
    %41 = arith.mulf %40, %39 : vector<16x128xbf16>
    %cst_23 = arith.constant 5.000000e-01 : bf16
    %42 = vector.broadcast %cst_23 : bf16 to vector<16x128xbf16>
    %43 = arith.addf %41, %42 : vector<16x128xbf16>
    %c0_24 = arith.constant 0 : index
    %c0_25 = arith.constant 0 : index
    %44 = vector.load %arg8[%c0_24, %c0_25] : memref<1x16xbf16, #tpu.memory_space<vmem>>, vector<1x16xbf16>
    %cst_26 = arith.constant dense<0.000000e+00> : vector<1x128xf32>
    %45 = tpu.matmul %44, %43, %cst_26 {dimension_numbers = #tpu.dot_dimension_numbers<[1], [0], [0], [1], [0, 0, 1, 1], [], []>} : vector<1x16xbf16>, vector<16x128xbf16>, vector<1x128xf32> -> vector<1x128xf32>
    %c0_27 = arith.constant 0 : index
    %c0_28 = arith.constant 0 : index
    %46 = vector.load %arg9[%c0_27, %c0_28] : memref<1x1xf32, #tpu.memory_space<vmem>>, vector<1x1xf32>
    %47 = vector.broadcast %46 : vector<1x1xf32> to vector<1x128xf32>
    %48 = arith.addf %45, %47 : vector<1x128xf32>
    %c0_29 = arith.constant 0 : index
    %c0_30 = arith.constant 0 : index
    %49 = vector.load %arg10[%c0_29, %c0_30] : memref<1x128xf32, #tpu.memory_space<vmem>>, vector<1x128xf32>
    tpu.vector_store %arg10[%c0_29, %c0_30], %48 {strides = array<i32>} : memref<1x128xf32, #tpu.memory_space<vmem>>, vector<1x128xf32>,
    return
  }
  func.func @transform_0(%arg0: i32) -> (i32, i32) {
    %c0_i32 = arith.constant 0 : i32
    %c0_i32_0 = arith.constant 0 : i32
    return %arg0, %c0_i32 : i32, i32
  }
  func.func @transform_1(%arg0: i32) -> (i32, i32) {
    %c0_i32 = arith.constant 0 : i32
    %c0_i32_0 = arith.constant 0 : i32
    %c0_i32_1 = arith.constant 0 : i32
    return %c0_i32, %c0_i32_0 : i32, i32
  }
  func.func @transform_2(%arg0: i32) -> (i32, i32) {
    %c0_i32 = arith.constant 0 : i32
    %c0_i32_0 = arith.constant 0 : i32
    %c0_i32_1 = arith.constant 0 : i32
    return %c0_i32, %c0_i32_0 : i32, i32
  }
  func.func @transform_3(%arg0: i32) -> (i32, i32) {
    %c0_i32 = arith.constant 0 : i32
    %c0_i32_0 = arith.constant 0 : i32
    %c0_i32_1 = arith.constant 0 : i32
    return %c0_i32, %c0_i32_0 : i32, i32
  }
  func.func @transform_4(%arg0: i32) -> (i32, i32) {
    %c0_i32 = arith.constant 0 : i32
    %c0_i32_0 = arith.constant 0 : i32
    %c0_i32_1 = arith.constant 0 : i32
    return %c0_i32, %c0_i32_0 : i32, i32
  }
  func.func @transform_5(%arg0: i32) -> (i32, i32) {
    %c0_i32 = arith.constant 0 : i32
    %c0_i32_0 = arith.constant 0 : i32
    %c0_i32_1 = arith.constant 0 : i32
    return %c0_i32, %c0_i32_0 : i32, i32
  }
  func.func @transform_6(%arg0: i32) -> (i32, i32) {
    %c0_i32 = arith.constant 0 : i32
    %c0_i32_0 = arith.constant 0 : i32
    %c0_i32_1 = arith.constant 0 : i32
    return %c0_i32, %c0_i32_0 : i32, i32
  }
  func.func @transform_7(%arg0: i32) -> (i32, i32) {
    %c0_i32 = arith.constant 0 : i32
    %c0_i32_0 = arith.constant 0 : i32
    %c0_i32_1 = arith.constant 0 : i32
    return %c0_i32, %c0_i32_0 : i32, i32
  }
  func.func @transform_8(%arg0: i32) -> (i32, i32) {
    %c0_i32 = arith.constant 0 : i32
    %c0_i32_0 = arith.constant 0 : i32
    %c0_i32_1 = arith.constant 0 : i32
    return %c0_i32, %c0_i32_0 : i32, i32
  }
  func.func @transform_9(%arg0: i32) -> (i32, i32) {
    %c0_i32 = arith.constant 0 : i32
    %c0_i32_0 = arith.constant 0 : i32
    return %c0_i32, %arg0 : i32, i32
  }
}

</mosaic_0001>

<llo_original>
// kernel: tpu_custom_call.1
$region0: #{tpu_custom_call.1}
  #allocation0 [shape = 'u32[]', space=smem, size = 0x4, offset = 0x4, fixed_abs, tag = 'smem constant byte address 0x4 - core index']
  #allocation1 [shape = 'u32[72,128]{1,0:T(1,128)}', space=vmem, size = 0x9000, scoped, tag = 'internal scratch']
  #allocation2 [shape = 'f32[1,1]{1,0:T(1,128)S(1)}', space=vmem, size = 0x200, scoped, tag = 'scoped memory for tpu_custom_call.1']
  %s0 = inlined_call_operand.vmem [shape: f32[128,32], index: 0, kind: input, shape index: {}]
  %s1 = inlined_call_operand.vmem [shape: bf16[64,32], index: 1, kind: input, shape index: {}]
  %s2 = inlined_call_operand.vmem [shape: f32[64,1], index: 2, kind: input, shape index: {}]
  %s3 = inlined_call_operand.vmem [shape: bf16[32,64], index: 3, kind: input, shape index: {}]
  %s4 = inlined_call_operand.vmem [shape: f32[32,1], index: 4, kind: input, shape index: {}]
  %s5 = inlined_call_operand.vmem [shape: bf16[16,32], index: 5, kind: input, shape index: {}]
  %s6 = inlined_call_operand.vmem [shape: f32[16,1], index: 6, kind: input, shape index: {}]
  %s7 = inlined_call_operand.vmem [shape: bf16[1,16], index: 7, kind: input, shape index: {}]
  %s8 = inlined_call_operand.<no memory space> [shape: f32[1,1], index: 8, kind: input, shape index: {}]
  %s9 = inlined_call_operand.hbm [shape: f32[1,128], index: 9, kind: output, shape index: {}]
  %s10 = sld [smem:[#allocation0]]
  $region46: #{tpu_custom_call.1} parent=0
    _
  %s12 = ssub.s32 1, %s10
  %s13 = scalar_select 0, %s12, %s10
  %v14 = vstv %s8
  %15 = vst [vmem:[#allocation2] sm:$0x1] %v14
  $region1: #{tpu_custom_call.1} parent=0
    #allocation3 [shape = 'u8[512]{0}', space=vmem, size = 0x400, scoped, tag = 'output window, operand 0, single buffered']
    #allocation4 [shape = 's32[1]{0}', space=sflag, size = 0x4, scoped, tag = 'scoped memory for tpu_custom_call.1']
    %16 = vsyncpa [#allocation4], 0
    // Predicated region
    $region2: #{tpu_custom_call.1} parent=1 // pred_check
      _
    $region3: #{tpu_custom_call.1} parent=1 // pred_check_branch
      %18 = sbr.rel (0) target = $region5
    $region4: #{tpu_custom_call.1} parent=1 // pred_region
      _
    $region5: #{tpu_custom_call.1} parent=1 // pred_fallthru
      _
    // Predicated region
    $region6: #{tpu_custom_call.1} parent=1 // pred_check
      _
    $region7: #{tpu_custom_call.1} parent=1 // pred_check_branch
      %20 = sbr.rel (0) target = $region9
    $region8: #{tpu_custom_call.1} parent=1 // pred_region
      _
    $region9: #{tpu_custom_call.1} parent=1 // pred_fallthru
      _
    // Predicated region
    $region10: #{tpu_custom_call.1} parent=1 // pred_check
      _
    $region11: #{tpu_custom_call.1} parent=1 // pred_check_branch
      %22 = sbr.rel (0) target = $region13
    $region12: #{tpu_custom_call.1} parent=1 // pred_region
      _
    $region13: #{tpu_custom_call.1} parent=1 // pred_fallthru
      _
    // Predicated region
    $region14: #{tpu_custom_call.1} parent=1 // pred_check
      _
    $region15: #{tpu_custom_call.1} parent=1 // pred_check_branch
      %24 = sbr.rel (0) target = $region17
    $region16: #{tpu_custom_call.1} parent=1 // pred_region
      _
    $region17: #{tpu_custom_call.1} parent=1 // pred_fallthru
      _
    // Predicated region
    $region18: #{tpu_custom_call.1} parent=1 // pred_check
      _
    $region19: #{tpu_custom_call.1} parent=1 // pred_check_branch
      %26 = sbr.rel (0) target = $region21
    $region20: #{tpu_custom_call.1} parent=1 // pred_region
      _
    $region21: #{tpu_custom_call.1} parent=1 // pred_fallthru
      _
    // Predicated region
    $region22: #{tpu_custom_call.1} parent=1 // pred_check
      _
    $region23: #{tpu_custom_call.1} parent=1 // pred_check_branch
      %28 = sbr.rel (0) target = $region25
    $region24: #{tpu_custom_call.1} parent=1 // pred_region
      _
    $region25: #{tpu_custom_call.1} parent=1 // pred_fallthru
      _
    // Predicated region
    $region26: #{tpu_custom_call.1} parent=1 // pred_check
      _
    $region27: #{tpu_custom_call.1} parent=1 // pred_check_branch
      %30 = sbr.rel (0) target = $region29
    $region28: #{tpu_custom_call.1} parent=1 // pred_region
      _
    $region29: #{tpu_custom_call.1} parent=1 // pred_fallthru
      _
    // Predicated region
    $region30: #{tpu_custom_call.1} parent=1 // pred_check
      _
    $region31: #{tpu_custom_call.1} parent=1 // pred_check_branch
      %32 = sbr.rel (0) target = $region33
    $region32: #{tpu_custom_call.1} parent=1 // pred_region
      _
    $region33: #{tpu_custom_call.1} parent=1 // pred_fallthru
      _
    // Predicated region
    $region34: #{tpu_custom_call.1} parent=1 // pred_check
      _
    $region35: #{tpu_custom_call.1} parent=1 // pred_check_branch
      %34 = sbr.rel (0) target = $region37
    $region36: #{tpu_custom_call.1} parent=1 // pred_region
      _
    $region37: #{tpu_custom_call.1} parent=1 // pred_fallthru
      _
    %v36 = vld [vmem:[%s0] sm:$0xff]
    %v37 = vld [vmem:[%s0 + $0x8] sm:$0xff]
    %v38 = vld [vmem:[%s0 + $0x10] sm:$0xff]
    %v39 = vld [vmem:[%s0 + $0x18] sm:$0xff]
    %v40 = vld [vmem:[%s0 + $0x20] sm:$0xff]
    %v41 = vld [vmem:[%s0 + $0x28] sm:$0xff]
    %v42 = vld [vmem:[%s0 + $0x30] sm:$0xff]
    %v43 = vld [vmem:[%s0 + $0x38] sm:$0xff]
    %v44 = vld [vmem:[%s0 + $0x40] sm:$0xff]
    %v45 = vld [vmem:[%s0 + $0x48] sm:$0xff]
    %v46 = vld [vmem:[%s0 + $0x50] sm:$0xff]
    %v47 = vld [vmem:[%s0 + $0x58] sm:$0xff]
    %v48 = vld [vmem:[%s0 + $0x60] sm:$0xff]
    %v49 = vld [vmem:[%s0 + $0x68] sm:$0xff]
    %v50 = vld [vmem:[%s0 + $0x70] sm:$0xff]
    %v51 = vld [vmem:[%s0 + $0x78] sm:$0xff]
    %v52 = vpack.c.bf16 %v37, %v36
    %v53 = vpack.c.bf16 %v39, %v38
    %v54 = vpack.c.bf16 %v41, %v40
    %v55 = vpack.c.bf16 %v43, %v42
    %v56 = vpack.c.bf16 %v45, %v44
    %v57 = vpack.c.bf16 %v47, %v46
    %v58 = vpack.c.bf16 %v49, %v48
    %v59 = vpack.c.bf16 %v51, %v50
    %v60 = vld [vmem:[%s1] sm:$0xf]
    %v61 = vld [vmem:[%s1 + $0x4] sm:$0xf]
    %v62 = vld [vmem:[%s1 + $0x8] sm:$0xf]
    %v63 = vld [vmem:[%s1 + $0xc] sm:$0xf]
    %v64 = vld [vmem:[%s1 + $0x10] sm:$0xf]
    %v65 = vld [vmem:[%s1 + $0x14] sm:$0xf]
    %v66 = vld [vmem:[%s1 + $0x18] sm:$0xf]
    %v67 = vld [vmem:[%s1 + $0x1c] sm:$0xf]
    %v76 = vunpack.c.l.b16 %v60
    %v77 = vunpack.c.l.b16 %v61
    %v78 = vunpack.c.l.b16 %v62
    %v79 = vunpack.c.l.b16 %v63
    %v80 = vunpack.c.l.b16 %v64
    %v81 = vunpack.c.l.b16 %v65
    %v82 = vunpack.c.l.b16 %v66
    %v83 = vunpack.c.l.b16 %v67
    %v84 = vpack.c.b16 %v77, %v76
    %v85 = vpack.c.b16 %v79, %v78
    %v86 = vpack.c.b16 %v81, %v80
    %v87 = vpack.c.b16 %v83, %v82
    %vm88 = vcmask 261120
    %v90 = vsel %vm88, %v84, 0
    %v93 = vsel %vm88, %v85, 0
    %v96 = vsel %vm88, %v86, 0
    %v99 = vsel %vm88, %v87, 0
    %v102 = vsel %vm88, %v52, 0
    %v105 = vsel %vm88, %v53, 0
    %v108 = vsel %vm88, %v54, 0
    %v111 = vsel %vm88, %v55, 0
    %v114 = vsel %vm88, %v56, 0
    %v117 = vsel %vm88, %v57, 0
    %v120 = vsel %vm88, %v58, 0
    %v123 = vsel %vm88, %v59, 0
    %125 = vmatpush.bf16.xpose.msra.mxu0 %v123
    %126 = vmatpush.bf16.xpose.msra.mxu0 %v120
    %127 = vmatpush.bf16.xpose.msra.mxu0 %v117
    %128 = vmatpush.bf16.xpose.msra.mxu0 %v114
    %129 = vmatpush.bf16.xpose.msra.mxu0 %v111
    %130 = vmatpush.bf16.xpose.msra.mxu0 %v108
    %131 = vmatpush.bf16.xpose.msra.mxu0 %v105
    %132 = vmatpush.bf16.xpose.msra.mxu0 %v102
    %133 = vmatmul.bf16.gmra.mxu0 %v90
    %v134 = vpop.f32.mrf.mxu0
    %v135 = vadd.f32 0.0, %v134
    %v136 = vpop.f32.mrf.mxu0
    %v137 = vadd.f32 0.0, %v136
    %138 = vmatmul.bf16.gmra.mxu0 %v93
    %v139 = vpop.f32.mrf.mxu0
    %v140 = vadd.f32 0.0, %v139
    %v141 = vpop.f32.mrf.mxu0
    %v142 = vadd.f32 0.0, %v141
    %143 = vmatmul.bf16.gmra.mxu0 %v96
    %v144 = vpop.f32.mrf.mxu0
    %v145 = vadd.f32 0.0, %v144
    %v146 = vpop.f32.mrf.mxu0
    %v147 = vadd.f32 0.0, %v146
    %148 = vmatmul.bf16.gmra.mxu0 %v99
    %v149 = vpop.f32.mrf.mxu0
    %v150 = vadd.f32 0.0, %v149
    %v151 = vpop.f32.mrf.mxu0
    %v152 = vadd.f32 0.0, %v151
    %153 = vdwg.mxu0
    %v154 = vpack.c.bf16 %v135, %v135
    %v155 = vpack.c.bf16 %v137, %v137
    %v156 = vpack.c.bf16 %v140, %v140
    %v157 = vpack.c.bf16 %v142, %v142
    %v158 = vpack.c.bf16 %v145, %v145
    %v159 = vpack.c.bf16 %v147, %v147
    %v160 = vpack.c.bf16 %v150, %v150
    %v161 = vpack.c.bf16 %v152, %v152
    %v162 = vld [vmem:[%s2] sm:$0xff]
    %v163 = vld [vmem:[%s2 + $0x8] sm:$0xff]
    %v164 = vld [vmem:[%s2 + $0x10] sm:$0xff]
    %v165 = vld [vmem:[%s2 + $0x18] sm:$0xff]
    %v166 = vld [vmem:[%s2 + $0x20] sm:$0xff]
    %v167 = vld [vmem:[%s2 + $0x28] sm:$0xff]
    %v168 = vld [vmem:[%s2 + $0x30] sm:$0xff]
    %v169 = vld [vmem:[%s2 + $0x38] sm:$0xff]
    %v170 = vpack.c.bf16 %v162, %v162
    %v171 = vpack.c.bf16 %v163, %v163
    %v172 = vpack.c.bf16 %v164, %v164
    %v173 = vpack.c.bf16 %v165, %v165
    %v174 = vpack.c.bf16 %v166, %v166
    %v175 = vpack.c.bf16 %v167, %v167
    %v176 = vpack.c.bf16 %v168, %v168
    %v177 = vpack.c.bf16 %v169, %v169
    %179 = vset.pattern.permute.xlu0 0
    %180 = vperm.xlu0 %179, %v170
    %v181 = vpop.permute.xlu0 %180
    %v184 = vunpack.c.l.s4 839922192
    %v185 = vunpack.c.0.s8 %v184
    %v186 = vperm.slane %v181, %v185
    %188 = vset.pattern.permute.xlu0 0
    %189 = vperm.xlu0 %188, %v171
    %v190 = vpop.permute.xlu0 %189
    %v193 = vunpack.c.l.s4 839922192
    %v194 = vunpack.c.0.s8 %v193
    %v195 = vperm.slane %v190, %v194
    %197 = vset.pattern.permute.xlu0 0
    %198 = vperm.xlu0 %197, %v172
    %v199 = vpop.permute.xlu0 %198
    %v202 = vunpack.c.l.s4 839922192
    %v203 = vunpack.c.0.s8 %v202
    %v204 = vperm.slane %v199, %v203
    %206 = vset.pattern.permute.xlu0 0
    %207 = vperm.xlu0 %206, %v173
    %v208 = vpop.permute.xlu0 %207
    %v211 = vunpack.c.l.s4 839922192
    %v212 = vunpack.c.0.s8 %v211
    %v213 = vperm.slane %v208, %v212
    %215 = vset.pattern.permute.xlu0 0
    %216 = vperm.xlu0 %215, %v174
    %v217 = vpop.permute.xlu0 %216
    %v220 = vunpack.c.l.s4 839922192
    %v221 = vunpack.c.0.s8 %v220
    %v222 = vperm.slane %v217, %v221
    %224 = vset.pattern.permute.xlu0 0
    %225 = vperm.xlu0 %224, %v175
    %v226 = vpop.permute.xlu0 %225
    %v229 = vunpack.c.l.s4 839922192
    %v230 = vunpack.c.0.s8 %v229
    %v231 = vperm.slane %v226, %v230
    %233 = vset.pattern.permute.xlu0 0
    %234 = vperm.xlu0 %233, %v176
    %v235 = vpop.permute.xlu0 %234
    %v238 = vunpack.c.l.s4 839922192
    %v239 = vunpack.c.0.s8 %v238
    %v240 = vperm.slane %v235, %v239
    %242 = vset.pattern.permute.xlu0 0
    %243 = vperm.xlu0 %242, %v177
    %v244 = vpop.permute.xlu0 %243
    %v247 = vunpack.c.l.s4 839922192
    %v248 = vunpack.c.0.s8 %v247
    %v249 = vperm.slane %v244, %v248
    %v250 = vunpack.c.l.bf16 %v154
    %v251 = vunpack.c.l.bf16 %v155
    %v252 = vunpack.c.l.bf16 %v156
    %v253 = vunpack.c.l.bf16 %v157
    %v254 = vunpack.c.l.bf16 %v158
    %v255 = vunpack.c.l.bf16 %v159
    %v256 = vunpack.c.l.bf16 %v160
    %v257 = vunpack.c.l.bf16 %v161
    %v258 = vunpack.c.l.bf16 %v186
    %v259 = vunpack.c.l.bf16 %v195
    %v260 = vunpack.c.l.bf16 %v204
    %v261 = vunpack.c.l.bf16 %v213
    %v262 = vunpack.c.l.bf16 %v222
    %v263 = vunpack.c.l.bf16 %v231
    %v264 = vunpack.c.l.bf16 %v240
    %v265 = vunpack.c.l.bf16 %v249
    %v266 = vadd.f32 %v250, %v258
    %v267 = vadd.f32 %v251, %v259
    %v268 = vadd.f32 %v252, %v260
    %v269 = vadd.f32 %v253, %v261
    %v270 = vadd.f32 %v254, %v262
    %v271 = vadd.f32 %v255, %v263
    %v272 = vadd.f32 %v256, %v264
    %v273 = vadd.f32 %v257, %v265
    %v274 = vpack.c.bf16 %v266, %v266
    %v275 = vpack.c.bf16 %v267, %v267
    %v276 = vpack.c.bf16 %v268, %v268
    %v277 = vpack.c.bf16 %v269, %v269
    %v278 = vpack.c.bf16 %v270, %v270
    %v279 = vpack.c.bf16 %v271, %v271
    %v280 = vpack.c.bf16 %v272, %v272
    %v281 = vpack.c.bf16 %v273, %v273
    %v282 = vunpack.c.l.bf16 %v274
    %v283 = vunpack.c.l.bf16 %v275
    %v284 = vunpack.c.l.bf16 %v276
    %v285 = vunpack.c.l.bf16 %v277
    %v286 = vunpack.c.l.bf16 %v278
    %v287 = vunpack.c.l.bf16 %v279
    %v288 = vunpack.c.l.bf16 %v280
    %v289 = vunpack.c.l.bf16 %v281
    %v290 = vmul.f32 %v282, 0.5
    %v291 = vmul.f32 %v283, 0.5
    %v292 = vmul.f32 %v284, 0.5
    %v293 = vmul.f32 %v285, 0.5
    %v294 = vmul.f32 %v286, 0.5
    %v295 = vmul.f32 %v287, 0.5
    %v296 = vmul.f32 %v288, 0.5
    %v297 = vmul.f32 %v289, 0.5
    %v298 = vpack.c.bf16 %v290, %v290
    %v299 = vpack.c.bf16 %v291, %v291
    %v300 = vpack.c.bf16 %v292, %v292
    %v301 = vpack.c.bf16 %v293, %v293
    %v302 = vpack.c.bf16 %v294, %v294
    %v303 = vpack.c.bf16 %v295, %v295
    %v304 = vpack.c.bf16 %v296, %v296
    %v305 = vpack.c.bf16 %v297, %v297
    %v306 = vunpack.c.l.bf16 %v298
    %v307 = vunpack.c.l.bf16 %v299
    %v308 = vunpack.c.l.bf16 %v300
    %v309 = vunpack.c.l.bf16 %v301
    %v310 = vunpack.c.l.bf16 %v302
    %v311 = vunpack.c.l.bf16 %v303
    %v312 = vunpack.c.l.bf16 %v304
    %v313 = vunpack.c.l.bf16 %v305
    %v314 = vtanh.pop %v306
    %v315 = vtanh.pop %v307
    %v316 = vtanh.pop %v308
    %v317 = vtanh.pop %v309
    %v318 = vtanh.pop %v310
    %v319 = vtanh.pop %v311
    %v320 = vtanh.pop %v312
    %v321 = vtanh.pop %v313
    %v322 = vpack.c.bf16 %v314, %v314
    %v323 = vpack.c.bf16 %v315, %v315
    %v324 = vpack.c.bf16 %v316, %v316
    %v325 = vpack.c.bf16 %v317, %v317
    %v326 = vpack.c.bf16 %v318, %v318
    %v327 = vpack.c.bf16 %v319, %v319
    %v328 = vpack.c.bf16 %v320, %v320
    %v329 = vpack.c.bf16 %v321, %v321
    %v330 = vunpack.c.l.bf16 %v322
    %v331 = vunpack.c.l.bf16 %v323
    %v332 = vunpack.c.l.bf16 %v324
    %v333 = vunpack.c.l.bf16 %v325
    %v334 = vunpack.c.l.bf16 %v326
    %v335 = vunpack.c.l.bf16 %v327
    %v336 = vunpack.c.l.bf16 %v328
    %v337 = vunpack.c.l.bf16 %v329
    %v338 = vmul.f32 %v330, 0.5
    %v339 = vmul.f32 %v331, 0.5
    %v340 = vmul.f32 %v332, 0.5
    %v341 = vmul.f32 %v333, 0.5
    %v342 = vmul.f32 %v334, 0.5
    %v343 = vmul.f32 %v335, 0.5
    %v344 = vmul.f32 %v336, 0.5
    %v345 = vmul.f32 %v337, 0.5
    %v346 = vpack.c.bf16 %v338, %v338
    %v347 = vpack.c.bf16 %v339, %v339
    %v348 = vpack.c.bf16 %v340, %v340
    %v349 = vpack.c.bf16 %v341, %v341
    %v350 = vpack.c.bf16 %v342, %v342
    %v351 = vpack.c.bf16 %v343, %v343
    %v352 = vpack.c.bf16 %v344, %v344
    %v353 = vpack.c.bf16 %v345, %v345
    %v354 = vunpack.c.l.bf16 %v346
    %v355 = vunpack.c.l.bf16 %v347
    %v356 = vunpack.c.l.bf16 %v348
    %v357 = vunpack.c.l.bf16 %v349
    %v358 = vunpack.c.l.bf16 %v350
    %v359 = vunpack.c.l.bf16 %v351
    %v360 = vunpack.c.l.bf16 %v352
    %v361 = vunpack.c.l.bf16 %v353
    %v362 = vadd.f32 %v354, 0.5
    %v363 = vadd.f32 %v355, 0.5
    %v364 = vadd.f32 %v356, 0.5
    %v365 = vadd.f32 %v357, 0.5
    %v366 = vadd.f32 %v358, 0.5
    %v367 = vadd.f32 %v359, 0.5
    %v368 = vadd.f32 %v360, 0.5
    %v369 = vadd.f32 %v361, 0.5
    %v370 = vpack.c.bf16 %v363, %v362
    %v371 = vpack.c.bf16 %v365, %v364
    %v372 = vpack.c.bf16 %v367, %v366
    %v373 = vpack.c.bf16 %v369, %v368
    %v374 = vld [vmem:[%s3] sm:$0xf]
    %v375 = vld [vmem:[%s3 + $0x4] sm:$0xf]
    %v376 = vld [vmem:[%s3 + $0x8] sm:$0xf]
    %v377 = vld [vmem:[%s3 + $0xc] sm:$0xf]
    %v382 = vunpack.c.l.b16 %v374
    %v383 = vunpack.c.l.b16 %v375
    %v384 = vunpack.c.l.b16 %v376
    %v385 = vunpack.c.l.b16 %v377
    %v386 = vpack.c.b16 %v383, %v382
    %v387 = vpack.c.b16 %v385, %v384
    %vm388 = vcmask 523264
    %v390 = vsel %vm388, %v386, 0
    %v393 = vsel %vm388, %v387, 0
    %395 = vmatpush.bf16.msra.mxu0 0
    %396 = vmatpush.bf16.msra.mxu0 0
    %397 = vmatpush.bf16.msra.mxu0 0
    %398 = vmatpush.bf16.msra.mxu0 0
    %399 = vmatpush.bf16.msra.mxu0 %v373
    %400 = vmatpush.bf16.msra.mxu0 %v372
    %401 = vmatpush.bf16.msra.mxu0 %v371
    %402 = vmatpush.bf16.msra.mxu0 %v370
    %403 = vmatmul.bf16.gmra.mxu0 %v390
    %v404 = vpop.f32.mrf.mxu0
    %v405 = vadd.f32 0.0, %v404
    %v406 = vpop.f32.mrf.mxu0
    %v407 = vadd.f32 0.0, %v406
    %408 = vmatmul.bf16.gmra.mxu0 %v393
    %v409 = vpop.f32.mrf.mxu0
    %v410 = vadd.f32 0.0, %v409
    %v411 = vpop.f32.mrf.mxu0
    %v412 = vadd.f32 0.0, %v411
    %413 = vdwg.mxu0
    %v414 = vpack.c.bf16 %v405, %v405
    %v415 = vpack.c.bf16 %v407, %v407
    %v416 = vpack.c.bf16 %v410, %v410
    %v417 = vpack.c.bf16 %v412, %v412
    %v418 = vld [vmem:[%s4] sm:$0xff]
    %v419 = vld [vmem:[%s4 + $0x8] sm:$0xff]
    %v420 = vld [vmem:[%s4 + $0x10] sm:$0xff]
    %v421 = vld [vmem:[%s4 + $0x18] sm:$0xff]
    %v422 = vpack.c.bf16 %v418, %v418
    %v423 = vpack.c.bf16 %v419, %v419
    %v424 = vpack.c.bf16 %v420, %v420
    %v425 = vpack.c.bf16 %v421, %v421
    %427 = vset.pattern.permute.xlu0 0
    %428 = vperm.xlu0 %427, %v422
    %v429 = vpop.permute.xlu0 %428
    %v432 = vunpack.c.l.s4 839922192
    %v433 = vunpack.c.0.s8 %v432
    %v434 = vperm.slane %v429, %v433
    %436 = vset.pattern.permute.xlu0 0
    %437 = vperm.xlu0 %436, %v423
    %v438 = vpop.permute.xlu0 %437
    %v441 = vunpack.c.l.s4 839922192
    %v442 = vunpack.c.0.s8 %v441
    %v443 = vperm.slane %v438, %v442
    %445 = vset.pattern.permute.xlu0 0
    %446 = vperm.xlu0 %445, %v424
    %v447 = vpop.permute.xlu0 %446
    %v450 = vunpack.c.l.s4 839922192
    %v451 = vunpack.c.0.s8 %v450
    %v452 = vperm.slane %v447, %v451
    %454 = vset.pattern.permute.xlu0 0
    %455 = vperm.xlu0 %454, %v425
    %v456 = vpop.permute.xlu0 %455
    %v459 = vunpack.c.l.s4 839922192
    %v460 = vunpack.c.0.s8 %v459
    %v461 = vperm.slane %v456, %v460
    %v462 = vunpack.c.l.bf16 %v414
    %v463 = vunpack.c.l.bf16 %v415
    %v464 = vunpack.c.l.bf16 %v416
    %v465 = vunpack.c.l.bf16 %v417
    %v466 = vunpack.c.l.bf16 %v434
    %v467 = vunpack.c.l.bf16 %v443
    %v468 = vunpack.c.l.bf16 %v452
    %v469 = vunpack.c.l.bf16 %v461
    %v470 = vadd.f32 %v462, %v466
    %v471 = vadd.f32 %v463, %v467
    %v472 = vadd.f32 %v464, %v468
    %v473 = vadd.f32 %v465, %v469
    %v474 = vpack.c.bf16 %v470, %v470
    %v475 = vpack.c.bf16 %v471, %v471
    %v476 = vpack.c.bf16 %v472, %v472
    %v477 = vpack.c.bf16 %v473, %v473
    %v478 = vunpack.c.l.bf16 %v474
    %v479 = vunpack.c.l.bf16 %v475
    %v480 = vunpack.c.l.bf16 %v476
    %v481 = vunpack.c.l.bf16 %v477
    %v482 = vmul.f32 %v478, 0.5
    %v483 = vmul.f32 %v479, 0.5
    %v484 = vmul.f32 %v480, 0.5
    %v485 = vmul.f32 %v481, 0.5
    %v486 = vpack.c.bf16 %v482, %v482
    %v487 = vpack.c.bf16 %v483, %v483
    %v488 = vpack.c.bf16 %v484, %v484
    %v489 = vpack.c.bf16 %v485, %v485
    %v490 = vunpack.c.l.bf16 %v486
    %v491 = vunpack.c.l.bf16 %v487
    %v492 = vunpack.c.l.bf16 %v488
    %v493 = vunpack.c.l.bf16 %v489
    %v494 = vtanh.pop %v490
    %v495 = vtanh.pop %v491
    %v496 = vtanh.pop %v492
    %v497 = vtanh.pop %v493
    %v498 = vpack.c.bf16 %v494, %v494
    %v499 = vpack.c.bf16 %v495, %v495
    %v500 = vpack.c.bf16 %v496, %v496
    %v501 = vpack.c.bf16 %v497, %v497
    %v502 = vunpack.c.l.bf16 %v498
    %v503 = vunpack.c.l.bf16 %v499
    %v504 = vunpack.c.l.bf16 %v500
    %v505 = vunpack.c.l.bf16 %v501
    %v506 = vmul.f32 %v502, 0.5
    %v507 = vmul.f32 %v503, 0.5
    %v508 = vmul.f32 %v504, 0.5
    %v509 = vmul.f32 %v505, 0.5
    %v510 = vpack.c.bf16 %v506, %v506
    %v511 = vpack.c.bf16 %v507, %v507
    %v512 = vpack.c.bf16 %v508, %v508
    %v513 = vpack.c.bf16 %v509, %v509
    %v514 = vunpack.c.l.bf16 %v510
    %v515 = vunpack.c.l.bf16 %v511
    %v516 = vunpack.c.l.bf16 %v512
    %v517 = vunpack.c.l.bf16 %v513
    %v518 = vadd.f32 %v514, 0.5
    %v519 = vadd.f32 %v515, 0.5
    %v520 = vadd.f32 %v516, 0.5
    %v521 = vadd.f32 %v517, 0.5
    %v522 = vpack.c.bf16 %v519, %v518
    %v523 = vpack.c.bf16 %v521, %v520
    %v524 = vld [vmem:[%s5] sm:$0xf]
    %v525 = vld [vmem:[%s5 + $0x4] sm:$0xf]
    %v528 = vunpack.c.l.b16 %v524
    %v529 = vunpack.c.l.b16 %v525
    %v530 = vpack.c.b16 %v529, %v528
    %v532 = vsel %vm88, %v530, 0
    %534 = vmatpush.bf16.msra.mxu0 0
    %535 = vmatpush.bf16.msra.mxu0 0
    %536 = vmatpush.bf16.msra.mxu0 0
    %537 = vmatpush.bf16.msra.mxu0 0
    %538 = vmatpush.bf16.msra.mxu0 0
    %539 = vmatpush.bf16.msra.mxu0 0
    %540 = vmatpush.bf16.msra.mxu0 %v523
    %541 = vmatpush.bf16.msra.mxu0 %v522
    %542 = vmatmul.bf16.gmra.mxu0 %v532
    %v543 = vpop.f32.mrf.mxu0
    %v544 = vadd.f32 0.0, %v543
    %v545 = vpop.f32.mrf.mxu0
    %v546 = vadd.f32 0.0, %v545
    %547 = vdwg.mxu0
    %v548 = vpack.c.bf16 %v544, %v544
    %v549 = vpack.c.bf16 %v546, %v546
    %v550 = vld [vmem:[%s6] sm:$0xff]
    %v551 = vld [vmem:[%s6 + $0x8] sm:$0xff]
    %v552 = vpack.c.bf16 %v550, %v550
    %v553 = vpack.c.bf16 %v551, %v551
    %555 = vset.pattern.permute.xlu0 0
    %556 = vperm.xlu0 %555, %v552
    %v557 = vpop.permute.xlu0 %556
    %v560 = vunpack.c.l.s4 839922192
    %v561 = vunpack.c.0.s8 %v560
    %v562 = vperm.slane %v557, %v561
    %564 = vset.pattern.permute.xlu0 0
    %565 = vperm.xlu0 %564, %v553
    %v566 = vpop.permute.xlu0 %565
    %v569 = vunpack.c.l.s4 839922192
    %v570 = vunpack.c.0.s8 %v569
    %v571 = vperm.slane %v566, %v570
    %v572 = vunpack.c.l.bf16 %v548
    %v573 = vunpack.c.l.bf16 %v549
    %v574 = vunpack.c.l.bf16 %v562
    %v575 = vunpack.c.l.bf16 %v571
    %v576 = vadd.f32 %v572, %v574
    %v577 = vadd.f32 %v573, %v575
    %v578 = vpack.c.bf16 %v576, %v576
    %v579 = vpack.c.bf16 %v577, %v577
    %v580 = vunpack.c.l.bf16 %v578
    %v581 = vunpack.c.l.bf16 %v579
    %v582 = vmul.f32 %v580, 0.5
    %v583 = vmul.f32 %v581, 0.5
    %v584 = vpack.c.bf16 %v582, %v582
    %v585 = vpack.c.bf16 %v583, %v583
    %v586 = vunpack.c.l.bf16 %v584
    %v587 = vunpack.c.l.bf16 %v585
    %v588 = vtanh.pop %v586
    %v589 = vtanh.pop %v587
    %v590 = vpack.c.bf16 %v588, %v588
    %v591 = vpack.c.bf16 %v589, %v589
    %v592 = vunpack.c.l.bf16 %v590
    %v593 = vunpack.c.l.bf16 %v591
    %v594 = vmul.f32 %v592, 0.5
    %v595 = vmul.f32 %v593, 0.5
    %v596 = vpack.c.bf16 %v594, %v594
    %v597 = vpack.c.bf16 %v595, %v595
    %v598 = vunpack.c.l.bf16 %v596
    %v599 = vunpack.c.l.bf16 %v597
    %v600 = vadd.f32 %v598, 0.5
    %v601 = vadd.f32 %v599, 0.5
    %v602 = vpack.c.bf16 %v601, %v600
    %v603 = vld [vmem:[%s7] sm:$0x1]
    %v604 = vld [vmem:[#allocation2] sm:$0x1]
    %606 = vset.pattern.permute.xlu0 0
    %607 = vperm.xlu0 %606, %v604
    %v608 = vpop.permute.xlu0 %607
    %v610 = vperm.slane %v608, 0
    %vm611 = vcmask 130048
    %v613 = vsel %vm611, %v603, 0
    %615 = vmatpush.bf16.msra.mxu0 0
    %616 = vmatpush.bf16.msra.mxu0 0
    %617 = vmatpush.bf16.msra.mxu0 0
    %618 = vmatpush.bf16.msra.mxu0 0
    %619 = vmatpush.bf16.msra.mxu0 0
    %620 = vmatpush.bf16.msra.mxu0 0
    %621 = vmatpush.bf16.msra.mxu0 0
    %622 = vmatpush.bf16.msra.mxu0 %v602
    %623 = vmatmul.bf16.gmra.mxu0 %v613
    %v624 = vpop.f32.mrf.mxu0
    %v625 = vadd.f32 %v610, %v624
    %v626 = vpop.f32.mrf.mxu0
    %627 = vdwg.mxu0
    %628 = vst [vmem:[#allocation3] sm:$0x1] %v625
    // Predicated region
    $region38: #{tpu_custom_call.1} parent=1 // pred_check
      _
    $region39: #{tpu_custom_call.1} parent=1 // pred_check_branch
      %630 = sbr.rel (0) target = $region41
    $region40: #{tpu_custom_call.1} parent=1 // pred_region
      %632 = vsyncadd [#allocation4], 0
      %s634 = sshll.u32 [#allocation3], 4
      %s635 = int_to_ptr.vmem [resolvable:$true] %s634
      %s636 = sshll.u32 %s9, 4
      %s637 = int_to_ptr.hbm [resolvable:$true] %s636
      %639 = dma.vmem_to_hbm [thread:$0]  %s635, 16, %s637, [#allocation4]
    $region41: #{tpu_custom_call.1} parent=1 // pred_fallthru
      _
    // Predicated region
    $region42: #{tpu_custom_call.1} parent=1 // pred_check
      _
    $region43: #{tpu_custom_call.1} parent=1 // pred_check_branch
      %641 = sbr.rel (0) target = $region45
    $region44: #{tpu_custom_call.1} parent=1 // pred_region
      %643 = dma.done [#allocation4], 16
    $region45: #{tpu_custom_call.1} parent=1 // pred_fallthru
      _
    %644 = vsyncpa [#allocation4], 1

</llo_original>
